<compile_context>
chip_gen: v6e
topology: v6e:2x2x1
jax: 0.10.0
libtpu: 0.0.40
codegen_flags: <defaults>
</compile_context>

<pallas_src>
import functools

import jax
import jax.numpy as jnp
from jax.experimental import pallas as pl
from jax.experimental.pallas import tpu as pltpu


def _discriminator_kernel(x_ref, w1_ref, b1_ref, w2_ref, b2_ref,
                          w3_ref, b3_ref, o_ref):
    x = x_ref[...]                                  # (2, TB)   batch on lanes
    w1 = w1_ref[...]                                # (256, 2)  f32

    # Layer 1 (fan_in=2): two rank-1 VPU updates instead of a K=2 MXU matmul.
    h1 = w1[:, 0:1] * x[0:1, :] + w1[:, 1:2] * x[1:2, :] + b1_ref[...]
    h1 = jnp.maximum(h1, 0.0)                       # (256, TB) f32

    # Layer 2: the only real matmul -> MXU, in bf16 with f32 accumulation.
    # (64,256)bf16 @ (256,TB)bf16 -> (64,TB)f32
    h2 = jnp.dot(w2_ref[...], h1.astype(jnp.bfloat16),
                 preferred_element_type=jnp.float32)
    h2 = jnp.maximum(h2 + b2_ref[...], 0.0)         # (64, TB) f32

    # Layer 3 (fan_out=1): VPU multiply + sublane reduction (lane-dense result).
    h3 = jnp.sum(w3_ref[...] * h2, axis=0, keepdims=True) + b3_ref[0]  # (1, TB)

    # Sigmoid (exp on the EUP; one divide per element on a (1,TB) row is tiny).
    o_ref[...] = (1.0 / (1.0 + jnp.exp(-h3))).astype(o_ref.dtype)


def _round_up(n, m):
    return (n + m - 1) // m * m


def _cdiv(a, b):
    return -(-a // b)


def _choose_tile(B, block_b):
    """Pick the batch tile (multiple of 128, lane width).

    - Large tiles (default up to 8192 columns) amortize the ~0.35 us per-step
      overhead; per-step VMEM stays well under the 32 MiB scoped limit.
    - If the whole batch would fit in one step but B >= 256, force >= 2 steps
      so the "parallel" grid axis can shard across v7x's two TensorCores.
    - Tile = round_up(ceil(B / n_steps), 128) keeps padding waste small.
    """
    B = max(int(B), 1)
    n_steps = max(_cdiv(B, block_b), 1)
    if n_steps == 1 and B >= 256:
        n_steps = 2
    return _round_up(_cdiv(B, n_steps), 128)


@functools.partial(jax.jit, static_argnames=("block_b",))
def discriminator_forward(x, params, *, block_b=8192):
    """x: (B, 2) float32.  Returns (B, 1) float32 sigmoid scores."""
    B = x.shape[0]
    TB = _choose_tile(B, block_b)
    B_pad = _round_up(B, TB)

    x_t = jnp.transpose(x).astype(jnp.float32)      # (2, B) -> batch on lane axis
    if B_pad != B:
        x_t = jnp.pad(x_t, ((0, 0), (0, B_pad - B)))

    w1, b1 = params["w1"], params["b1"]             # (256,2), (256,1) f32
    w2, b2 = params["w2"], params["b2"]             # (64,256), (64,1)
    w3, b3 = params["w3"], params["b3"]             # (64,1),  (1,)

    w2_bf16 = w2.astype(jnp.bfloat16)               # bf16 MXU operand

    def const(shape):                               # weight resident across steps
        return pl.BlockSpec(shape, lambda i: (0, 0))

    out_t = pl.pallas_call(
        _discriminator_kernel,
        out_shape=jax.ShapeDtypeStruct((1, B_pad), jnp.float32),
        grid=(B_pad // TB,),
        in_specs=[
            pl.BlockSpec((2, TB), lambda i: (0, i)),               # x^T tile
            const((256, 2)),                                       # w1 (f32)
            const((256, 1)),                                       # b1
            const((64, 256)),                                      # w2 (bf16)
            const((64, 1)),                                        # b2
            const((64, 1)),                                        # w3 (column)
            pl.BlockSpec(memory_space=pltpu.MemorySpace.SMEM),     # b3 scalar
        ],
        out_specs=pl.BlockSpec((1, TB), lambda i: (0, i)),         # lane-dense out
        compiler_params=pltpu.CompilerParams(
            dimension_semantics=("parallel",),
            vmem_limit_bytes=32 * 1024 * 1024,
        ),
    )(x_t, w1, b1, w2_bf16, b2, w3, b3)

    return out_t[0, :B].reshape(B, 1)


def init_params(key):
    """PyTorch nn.Linear default init (U[-1/sqrt(fan_in), +1/sqrt(fan_in)]).

    Weights are stored in the kernel-native transposed layout:
      w1: (256, 2), b1: (256, 1); w2: (64, 256), b2: (64, 1);
      w3: (64, 1) column; b3: (1,) scalar.
    """
    def linear(key, fan_in, fan_out):
        kw, kb = jax.random.split(key)
        bound = 1.0 / jnp.sqrt(float(fan_in))
        w = jax.random.uniform(kw, (fan_out, fan_in), jnp.float32, -bound, bound)
        b = jax.random.uniform(kb, (fan_out, 1), jnp.float32, -bound, bound)
        return w, b

    k1, k2, k3 = jax.random.split(key, 3)
    w1, b1 = linear(k1, 2, 256)
    w2, b2 = linear(k2, 256, 64)
    w3, b3 = linear(k3, 64, 1)
    return {"w1": w1, "b1": b1,
            "w2": w2, "b2": b2,
            "w3": w3.T,               # (64, 1)
            "b3": b3.reshape(1)}      # (1,)


def _reference_forward(x, p):
    h1 = jnp.maximum(x @ p["w1"].T + p["b1"].T, 0.0)
    h2 = jnp.maximum(h1 @ p["w2"].T + p["b2"].T, 0.0)
    return jax.nn.sigmoid(h2 @ p["w3"] + p["b3"])


if __name__ == "__main__":
    key = jax.random.PRNGKey(0)
    kx, kx2, kx3, kp = jax.random.split(key, 4)
    params = init_params(kp)

    # Tolerance relaxed vs. a pure-f32 kernel because layer 2 runs in bf16 on
    # the MXU (deliberate precision trade-off per the perf review).
    ATOL = 1e-2

    # Small case (single tile, heavy padding).
    B = 8
    x = jax.random.normal(kx, (B, 2), dtype=jnp.float32)
    out = jax.block_until_ready(discriminator_forward(x, params))
    ref = _reference_forward(x, params)
    assert out.shape == (B, 1)
    assert jnp.allclose(out, ref, atol=ATOL, rtol=ATOL)

    # Multi-tile case with a ragged tail (exercises the grid + padding path).
    B2 = 300
    x2 = jax.random.normal(kx2, (B2, 2), dtype=jnp.float32)
    out2 = jax.block_until_ready(discriminator_forward(x2, params, block_b=128))
    ref2 = _reference_forward(x2, params)
    assert out2.shape == (B2, 1)
    assert jnp.allclose(out2, ref2, atol=ATOL, rtol=ATOL)

    # Mid-size case with the default tile: exercises the ">= 2 grid steps"
    # clamp (so both v7x TensorCores get work) and the ragged last tile.
    B3 = 3000
    x3 = jax.random.normal(kx3, (B3, 2), dtype=jnp.float32)
    out3 = jax.block_until_ready(discriminator_forward(x3, params))
    ref3 = _reference_forward(x3, params)
    assert out3.shape == (B3, 1)
    assert jnp.allclose(out3, ref3, atol=ATOL, rtol=ATOL)

    print("KERNEL_OK")
</pallas_src>

<mosaic_0001>
module attributes {stable_mosaic.version = 11 : i64} {
  func.func @_discriminator_kernel(%arg0: i32, %arg1: memref<2x128xf32, #tpu.memory_space<vmem>>, %arg2: memref<256x2xf32, #tpu.memory_space<vmem>>, %arg3: memref<256x1xf32, #tpu.memory_space<vmem>>, %arg4: memref<64x256xbf16, #tpu.memory_space<vmem>>, %arg5: memref<64x1xf32, #tpu.memory_space<vmem>>, %arg6: memref<64x1xf32, #tpu.memory_space<vmem>>, %arg7: memref<1xf32, #tpu.memory_space<smem>>, %arg8: memref<1x128xf32, #tpu.memory_space<vmem>>) attributes {dimension_semantics = [#tpu.dimension_semantics<parallel>], iteration_bounds = array<i64: 1>, scalar_prefetch = 0 : i64, scratch_operands = 0 : i64, tpu.core_type = #tpu.core_type<tc>, window_params = [{transform_indices = @transform_0, window_bounds = array<i64: 2, 128>}, {pipeline_mode = #tpu.pipeline_mode<synchronous>, transform_indices = @transform_1, window_bounds = array<i64: 256, 2>}, {pipeline_mode = #tpu.pipeline_mode<synchronous>, transform_indices = @transform_2, window_bounds = array<i64: 256, 1>}, {pipeline_mode = #tpu.pipeline_mode<synchronous>, transform_indices = @transform_3, window_bounds = array<i64: 64, 256>}, {pipeline_mode = #tpu.pipeline_mode<synchronous>, transform_indices = @transform_4, window_bounds = array<i64: 64, 1>}, {pipeline_mode = #tpu.pipeline_mode<synchronous>, transform_indices = @transform_5, window_bounds = array<i64: 64, 1>}, {transform_indices = @transform_6, window_bounds = array<i64: 1>}, {transform_indices = @transform_7, window_bounds = array<i64: 1, 128>}]} {
    %c0 = arith.constant 0 : index
    %c0_0 = arith.constant 0 : index
    %0 = vector.load %arg1[%c0, %c0_0] : memref<2x128xf32, #tpu.memory_space<vmem>>, vector<2x128xf32>
    %c0_1 = arith.constant 0 : index
    %c0_2 = arith.constant 0 : index
    %1 = vector.load %arg2[%c0_1, %c0_2] : memref<256x2xf32, #tpu.memory_space<vmem>>, vector<256x2xf32>
    %2 = vector.extract_strided_slice %1 {offsets = [0, 0], sizes = [256, 1], strides = [1, 1]} : vector<256x2xf32> to vector<256x1xf32>
    %3 = vector.extract_strided_slice %0 {offsets = [0, 0], sizes = [1, 128], strides = [1, 1]} : vector<2x128xf32> to vector<1x128xf32>
    %4 = vector.broadcast %2 : vector<256x1xf32> to vector<256x128xf32>
    %5 = vector.broadcast %3 : vector<1x128xf32> to vector<256x128xf32>
    %6 = arith.mulf %4, %5 : vector<256x128xf32>
    %7 = vector.extract_strided_slice %1 {offsets = [0, 1], sizes = [256, 1], strides = [1, 1]} : vector<256x2xf32> to vector<256x1xf32>
    %8 = vector.extract_strided_slice %0 {offsets = [1, 0], sizes = [1, 128], strides = [1, 1]} : vector<2x128xf32> to vector<1x128xf32>
    %9 = vector.broadcast %7 : vector<256x1xf32> to vector<256x128xf32>
    %10 = vector.broadcast %8 : vector<1x128xf32> to vector<256x128xf32>
    %11 = arith.mulf %9, %10 : vector<256x128xf32>
    %12 = arith.addf %6, %11 : vector<256x128xf32>
    %c0_3 = arith.constant 0 : index
    %c0_4 = arith.constant 0 : index
    %13 = vector.load %arg3[%c0_3, %c0_4] : memref<256x1xf32, #tpu.memory_space<vmem>>, vector<256x1xf32>
    %14 = vector.broadcast %13 : vector<256x1xf32> to vector<256x128xf32>
    %15 = arith.addf %12, %14 : vector<256x128xf32>
    %cst = arith.constant 0.000000e+00 : f32
    %16 = vector.broadcast %cst : f32 to vector<256x128xf32>
    %17 = arith.maximumf %15, %16 : vector<256x128xf32>
    %c0_5 = arith.constant 0 : index
    %c0_6 = arith.constant 0 : index
    %18 = vector.load %arg4[%c0_5, %c0_6] : memref<64x256xbf16, #tpu.memory_space<vmem>>, vector<64x256xbf16>
    %19 = arith.truncf %17 : vector<256x128xf32> to vector<256x128xbf16>
    %cst_7 = arith.constant dense<0.000000e+00> : vector<64x128xf32>
    %20 = tpu.matmul %18, %19, %cst_7 {dimension_numbers = #tpu.dot_dimension_numbers<[1], [0], [0], [1], [0, 0, 1, 1], [], []>} : vector<64x256xbf16>, vector<256x128xbf16>, vector<64x128xf32> -> vector<64x128xf32>
    %c0_8 = arith.constant 0 : index
    %c0_9 = arith.constant 0 : index
    %21 = vector.load %arg5[%c0_8, %c0_9] : memref<64x1xf32, #tpu.memory_space<vmem>>, vector<64x1xf32>
    %22 = vector.broadcast %21 : vector<64x1xf32> to vector<64x128xf32>
    %23 = arith.addf %20, %22 : vector<64x128xf32>
    %cst_10 = arith.constant 0.000000e+00 : f32
    %24 = vector.broadcast %cst_10 : f32 to vector<64x128xf32>
    %25 = arith.maximumf %23, %24 : vector<64x128xf32>
    %c0_11 = arith.constant 0 : index
    %c0_12 = arith.constant 0 : index
    %26 = vector.load %arg6[%c0_11, %c0_12] : memref<64x1xf32, #tpu.memory_space<vmem>>, vector<64x1xf32>
    %27 = vector.broadcast %26 : vector<64x1xf32> to vector<64x128xf32>
    %28 = arith.mulf %27, %25 : vector<64x128xf32>
    %cst_13 = arith.constant dense<0.000000e+00> : vector<128xf32>
    %29 = vector.multi_reduction <add>, %28, %cst_13 [0] : vector<64x128xf32> to vector<128xf32>
    %30 = vector.shape_cast %29 : vector<128xf32> to vector<1x128xf32>
    %c0_14 = arith.constant 0 : index
    %31 = memref.load %arg7[%c0_14] : memref<1xf32, #tpu.memory_space<smem>>
    %32 = vector.broadcast %31 : f32 to vector<1x128xf32>
    %33 = arith.addf %30, %32 : vector<1x128xf32>
    %cst_15 = arith.constant 0.000000e+00 : f32
    %34 = vector.broadcast %cst_15 : f32 to vector<1x128xf32>
    %35 = arith.subf %34, %33 : vector<1x128xf32>
    %36 = math.exp %35 : vector<1x128xf32>
    %cst_16 = arith.constant 1.000000e+00 : f32
    %37 = vector.broadcast %cst_16 : f32 to vector<1x128xf32>
    %38 = arith.addf %37, %36 : vector<1x128xf32>
    %cst_17 = arith.constant 1.000000e+00 : f32
    %39 = vector.broadcast %cst_17 : f32 to vector<1x128xf32>
    %40 = arith.divf %39, %38 : vector<1x128xf32>
    %c0_18 = arith.constant 0 : index
    %c0_19 = arith.constant 0 : index
    %41 = vector.load %arg8[%c0_18, %c0_19] : memref<1x128xf32, #tpu.memory_space<vmem>>, vector<1x128xf32>
    tpu.vector_store %arg8[%c0_18, %c0_19], %40 {strides = array<i32>} : memref<1x128xf32, #tpu.memory_space<vmem>>, vector<1x128xf32>,
    return
  }
  func.func @transform_0(%arg0: i32) -> (i32, i32) {
    %c0_i32 = arith.constant 0 : i32
    %c0_i32_0 = arith.constant 0 : i32
    return %c0_i32, %arg0 : i32, i32
  }
  func.func @transform_1(%arg0: i32) -> (i32, i32) {
    %c0_i32 = arith.constant 0 : i32
    %c0_i32_0 = arith.constant 0 : i32
    %c0_i32_1 = arith.constant 0 : i32
    return %c0_i32, %c0_i32_0 : i32, i32
  }
  func.func @transform_2(%arg0: i32) -> (i32, i32) {
    %c0_i32 = arith.constant 0 : i32
    %c0_i32_0 = arith.constant 0 : i32
    %c0_i32_1 = arith.constant 0 : i32
    return %c0_i32, %c0_i32_0 : i32, i32
  }
  func.func @transform_3(%arg0: i32) -> (i32, i32) {
    %c0_i32 = arith.constant 0 : i32
    %c0_i32_0 = arith.constant 0 : i32
    %c0_i32_1 = arith.constant 0 : i32
    return %c0_i32, %c0_i32_0 : i32, i32
  }
  func.func @transform_4(%arg0: i32) -> (i32, i32) {
    %c0_i32 = arith.constant 0 : i32
    %c0_i32_0 = arith.constant 0 : i32
    %c0_i32_1 = arith.constant 0 : i32
    return %c0_i32, %c0_i32_0 : i32, i32
  }
  func.func @transform_5(%arg0: i32) -> (i32, i32) {
    %c0_i32 = arith.constant 0 : i32
    %c0_i32_0 = arith.constant 0 : i32
    %c0_i32_1 = arith.constant 0 : i32
    return %c0_i32, %c0_i32_0 : i32, i32
  }
  func.func @transform_6(%arg0: i32) -> i32 {
    %c0_i32 = arith.constant 0 : i32
    %c0_i32_0 = arith.constant 0 : i32
    return %c0_i32 : i32
  }
  func.func @transform_7(%arg0: i32) -> (i32, i32) {
    %c0_i32 = arith.constant 0 : i32
    %c0_i32_0 = arith.constant 0 : i32
    return %c0_i32, %arg0 : i32, i32
  }
}

</mosaic_0001>

<llo_original>
// kernel: discriminator_forward.1
$region0: #{discriminator_forward.1}
  #allocation0 [shape = 'u32[]', space=smem, size = 0x4, offset = 0x4, fixed_abs, tag = 'smem constant byte address 0x4 - core index']
  #allocation1 [shape = 'u32[144,128]{1,0:T(1,128)}', space=vmem, size = 0x12000, scoped, tag = 'internal scratch']
  #allocation2 [shape = 'f32[1]{0:T(128)S(6)}', space=smem, size = 0x200, scoped, tag = 'scoped memory for discriminator_forward.1']
  %s0 = inlined_call_operand.vmem [shape: f32[2,128], index: 0, kind: input, shape index: {}]
  %s1 = inlined_call_operand.vmem [shape: f32[256,2], index: 1, kind: input, shape index: {}]
  %s2 = inlined_call_operand.vmem [shape: f32[256,1], index: 2, kind: input, shape index: {}]
  %s3 = inlined_call_operand.vmem [shape: bf16[64,256], index: 3, kind: input, shape index: {}]
  %s4 = inlined_call_operand.vmem [shape: f32[64,1], index: 4, kind: input, shape index: {}]
  %s5 = inlined_call_operand.vmem [shape: f32[64,1], index: 5, kind: input, shape index: {}]
  %s6 = inlined_call_operand.<no memory space> [shape: f32[1], index: 6, kind: input, shape index: {}]
  %s7 = inlined_call_operand.vmem [shape: f32[1,128], index: 7, kind: output, shape index: {}]
  %s8 = sld [smem:[#allocation0]]
  $region38: #{discriminator_forward.1} parent=0
    _
  %s10 = ssub.s32 1, %s8
  %s11 = scalar_select 0, %s10, %s8
  %12 = sst [smem:[#allocation2]] %s6
  // Predicated region
  $region2: #{discriminator_forward.1} parent=0 // pred_check
    _
  $region3: #{discriminator_forward.1} parent=0 // pred_check_branch
    %14 = sbr.rel (0) target = $region5
  $region4: #{discriminator_forward.1} parent=0 // pred_region
    _
  $region5: #{discriminator_forward.1} parent=0 // pred_fallthru
    _
  // Predicated region
  $region6: #{discriminator_forward.1} parent=0 // pred_check
    _
  $region7: #{discriminator_forward.1} parent=0 // pred_check_branch
    %16 = sbr.rel (0) target = $region9
  $region8: #{discriminator_forward.1} parent=0 // pred_region
    _
  $region9: #{discriminator_forward.1} parent=0 // pred_fallthru
    _
  // Predicated region
  $region10: #{discriminator_forward.1} parent=0 // pred_check
    _
  $region11: #{discriminator_forward.1} parent=0 // pred_check_branch
    %18 = sbr.rel (0) target = $region13
  $region12: #{discriminator_forward.1} parent=0 // pred_region
    _
  $region13: #{discriminator_forward.1} parent=0 // pred_fallthru
    _
  // Predicated region
  $region14: #{discriminator_forward.1} parent=0 // pred_check
    _
  $region15: #{discriminator_forward.1} parent=0 // pred_check_branch
    %20 = sbr.rel (0) target = $region17
  $region16: #{discriminator_forward.1} parent=0 // pred_region
    _
  $region17: #{discriminator_forward.1} parent=0 // pred_fallthru
    _
  // Predicated region
  $region18: #{discriminator_forward.1} parent=0 // pred_check
    _
  $region19: #{discriminator_forward.1} parent=0 // pred_check_branch
    %22 = sbr.rel (0) target = $region21
  $region20: #{discriminator_forward.1} parent=0 // pred_region
    _
  $region21: #{discriminator_forward.1} parent=0 // pred_fallthru
    _
  // Predicated region
  $region22: #{discriminator_forward.1} parent=0 // pred_check
    _
  $region23: #{discriminator_forward.1} parent=0 // pred_check_branch
    %24 = sbr.rel (0) target = $region25
  $region24: #{discriminator_forward.1} parent=0 // pred_region
    _
  $region25: #{discriminator_forward.1} parent=0 // pred_fallthru
    _
  // Predicated region
  $region26: #{discriminator_forward.1} parent=0 // pred_check
    _
  $region27: #{discriminator_forward.1} parent=0 // pred_check_branch
    %26 = sbr.rel (0) target = $region29
  $region28: #{discriminator_forward.1} parent=0 // pred_region
    _
  $region29: #{discriminator_forward.1} parent=0 // pred_fallthru
    _
  %v28 = vld [vmem:[%s0] sm:$0x3]
  %v29 = vld [vmem:[%s1] sm:$0xff]
  %v30 = vld [vmem:[%s1 + $0x8] sm:$0xff]
  %v31 = vld [vmem:[%s1 + $0x10] sm:$0xff]
  %v32 = vld [vmem:[%s1 + $0x18] sm:$0xff]
  %v33 = vld [vmem:[%s1 + $0x20] sm:$0xff]
  %v34 = vld [vmem:[%s1 + $0x28] sm:$0xff]
  %v35 = vld [vmem:[%s1 + $0x30] sm:$0xff]
  %v36 = vld [vmem:[%s1 + $0x38] sm:$0xff]
  %v37 = vld [vmem:[%s1 + $0x40] sm:$0xff]
  %v38 = vld [vmem:[%s1 + $0x48] sm:$0xff]
  %v39 = vld [vmem:[%s1 + $0x50] sm:$0xff]
  %v40 = vld [vmem:[%s1 + $0x58] sm:$0xff]
  %v41 = vld [vmem:[%s1 + $0x60] sm:$0xff]
  %v42 = vld [vmem:[%s1 + $0x68] sm:$0xff]
  %v43 = vld [vmem:[%s1 + $0x70] sm:$0xff]
  %v44 = vld [vmem:[%s1 + $0x78] sm:$0xff]
  %v45 = vld [vmem:[%s1 + $0x80] sm:$0xff]
  %v46 = vld [vmem:[%s1 + $0x88] sm:$0xff]
  %v47 = vld [vmem:[%s1 + $0x90] sm:$0xff]
  %v48 = vld [vmem:[%s1 + $0x98] sm:$0xff]
  %v49 = vld [vmem:[%s1 + $0xa0] sm:$0xff]
  %v50 = vld [vmem:[%s1 + $0xa8] sm:$0xff]
  %v51 = vld [vmem:[%s1 + $0xb0] sm:$0xff]
  %v52 = vld [vmem:[%s1 + $0xb8] sm:$0xff]
  %v53 = vld [vmem:[%s1 + $0xc0] sm:$0xff]
  %v54 = vld [vmem:[%s1 + $0xc8] sm:$0xff]
  %v55 = vld [vmem:[%s1 + $0xd0] sm:$0xff]
  %v56 = vld [vmem:[%s1 + $0xd8] sm:$0xff]
  %v57 = vld [vmem:[%s1 + $0xe0] sm:$0xff]
  %v58 = vld [vmem:[%s1 + $0xe8] sm:$0xff]
  %v59 = vld [vmem:[%s1 + $0xf0] sm:$0xff]
  %v60 = vld [vmem:[%s1 + $0xf8] sm:$0xff]
  %62 = vset.pattern.permute.xlu0 0
  %63 = vperm.xlu0 %62, %v29
  %v64 = vpop.permute.xlu0 %63
  %67 = vset.pattern.permute.xlu0 0
  %68 = vperm.xlu0 %67, %v30
  %v69 = vpop.permute.xlu0 %68
  %72 = vset.pattern.permute.xlu0 0
  %73 = vperm.xlu0 %72, %v31
  %v74 = vpop.permute.xlu0 %73
  %77 = vset.pattern.permute.xlu0 0
  %78 = vperm.xlu0 %77, %v32
  %v79 = vpop.permute.xlu0 %78
  %82 = vset.pattern.permute.xlu0 0
  %83 = vperm.xlu0 %82, %v33
  %v84 = vpop.permute.xlu0 %83
  %87 = vset.pattern.permute.xlu0 0
  %88 = vperm.xlu0 %87, %v34
  %v89 = vpop.permute.xlu0 %88
  %92 = vset.pattern.permute.xlu0 0
  %93 = vperm.xlu0 %92, %v35
  %v94 = vpop.permute.xlu0 %93
  %97 = vset.pattern.permute.xlu0 0
  %98 = vperm.xlu0 %97, %v36
  %v99 = vpop.permute.xlu0 %98
  %102 = vset.pattern.permute.xlu0 0
  %103 = vperm.xlu0 %102, %v37
  %v104 = vpop.permute.xlu0 %103
  %107 = vset.pattern.permute.xlu0 0
  %108 = vperm.xlu0 %107, %v38
  %v109 = vpop.permute.xlu0 %108
  %112 = vset.pattern.permute.xlu0 0
  %113 = vperm.xlu0 %112, %v39
  %v114 = vpop.permute.xlu0 %113
  %117 = vset.pattern.permute.xlu0 0
  %118 = vperm.xlu0 %117, %v40
  %v119 = vpop.permute.xlu0 %118
  %122 = vset.pattern.permute.xlu0 0
  %123 = vperm.xlu0 %122, %v41
  %v124 = vpop.permute.xlu0 %123
  %127 = vset.pattern.permute.xlu0 0
  %128 = vperm.xlu0 %127, %v42
  %v129 = vpop.permute.xlu0 %128
  %132 = vset.pattern.permute.xlu0 0
  %133 = vperm.xlu0 %132, %v43
  %v134 = vpop.permute.xlu0 %133
  %137 = vset.pattern.permute.xlu0 0
  %138 = vperm.xlu0 %137, %v44
  %v139 = vpop.permute.xlu0 %138
  %142 = vset.pattern.permute.xlu0 0
  %143 = vperm.xlu0 %142, %v45
  %v144 = vpop.permute.xlu0 %143
  %147 = vset.pattern.permute.xlu0 0
  %148 = vperm.xlu0 %147, %v46
  %v149 = vpop.permute.xlu0 %148
  %152 = vset.pattern.permute.xlu0 0
  %153 = vperm.xlu0 %152, %v47
  %v154 = vpop.permute.xlu0 %153
  %157 = vset.pattern.permute.xlu0 0
  %158 = vperm.xlu0 %157, %v48
  %v159 = vpop.permute.xlu0 %158
  %162 = vset.pattern.permute.xlu0 0
  %163 = vperm.xlu0 %162, %v49
  %v164 = vpop.permute.xlu0 %163
  %167 = vset.pattern.permute.xlu0 0
  %168 = vperm.xlu0 %167, %v50
  %v169 = vpop.permute.xlu0 %168
  %172 = vset.pattern.permute.xlu0 0
  %173 = vperm.xlu0 %172, %v51
  %v174 = vpop.permute.xlu0 %173
  %177 = vset.pattern.permute.xlu0 0
  %178 = vperm.xlu0 %177, %v52
  %v179 = vpop.permute.xlu0 %178
  %182 = vset.pattern.permute.xlu0 0
  %183 = vperm.xlu0 %182, %v53
  %v184 = vpop.permute.xlu0 %183
  %187 = vset.pattern.permute.xlu0 0
  %188 = vperm.xlu0 %187, %v54
  %v189 = vpop.permute.xlu0 %188
  %192 = vset.pattern.permute.xlu0 0
  %193 = vperm.xlu0 %192, %v55
  %v194 = vpop.permute.xlu0 %193
  %197 = vset.pattern.permute.xlu0 0
  %198 = vperm.xlu0 %197, %v56
  %v199 = vpop.permute.xlu0 %198
  %202 = vset.pattern.permute.xlu0 0
  %203 = vperm.xlu0 %202, %v57
  %v204 = vpop.permute.xlu0 %203
  %207 = vset.pattern.permute.xlu0 0
  %208 = vperm.xlu0 %207, %v58
  %v209 = vpop.permute.xlu0 %208
  %212 = vset.pattern.permute.xlu0 0
  %213 = vperm.xlu0 %212, %v59
  %v214 = vpop.permute.xlu0 %213
  %217 = vset.pattern.permute.xlu0 0
  %218 = vperm.xlu0 %217, %v60
  %v219 = vpop.permute.xlu0 %218
  %v221 = vlaneseq
  %v222 = vshrl.u32 %v221, 7
  %v223 = vsub.s32 0, %v222
  %v224 = vrot.slane %v28, %v223
  %v225 = vmul.f32 %v64, %v224
  %v226 = vmul.f32 %v69, %v224
  %v227 = vmul.f32 %v74, %v224
  %v228 = vmul.f32 %v79, %v224
  %v229 = vmul.f32 %v84, %v224
  %v230 = vmul.f32 %v89, %v224
  %v231 = vmul.f32 %v94, %v224
  %v232 = vmul.f32 %v99, %v224
  %v233 = vmul.f32 %v104, %v224
  %v234 = vmul.f32 %v109, %v224
  %v235 = vmul.f32 %v114, %v224
  %v236 = vmul.f32 %v119, %v224
  %v237 = vmul.f32 %v124, %v224
  %v238 = vmul.f32 %v129, %v224
  %v239 = vmul.f32 %v134, %v224
  %v240 = vmul.f32 %v139, %v224
  %v241 = vmul.f32 %v144, %v224
  %v242 = vmul.f32 %v149, %v224
  %v243 = vmul.f32 %v154, %v224
  %v244 = vmul.f32 %v159, %v224
  %v245 = vmul.f32 %v164, %v224
  %v246 = vmul.f32 %v169, %v224
  %v247 = vmul.f32 %v174, %v224
  %v248 = vmul.f32 %v179, %v224
  %v249 = vmul.f32 %v184, %v224
  %v250 = vmul.f32 %v189, %v224
  %v251 = vmul.f32 %v194, %v224
  %v252 = vmul.f32 %v199, %v224
  %v253 = vmul.f32 %v204, %v224
  %v254 = vmul.f32 %v209, %v224
  %v255 = vmul.f32 %v214, %v224
  %v256 = vmul.f32 %v219, %v224
  %257 = vset.pattern.permute.xlu0 1
  %258 = vperm.xlu0 %257, %v29
  %v259 = vpop.permute.xlu0 %258
  %261 = vset.pattern.permute.xlu0 1
  %262 = vperm.xlu0 %261, %v30
  %v263 = vpop.permute.xlu0 %262
  %265 = vset.pattern.permute.xlu0 1
  %266 = vperm.xlu0 %265, %v31
  %v267 = vpop.permute.xlu0 %266
  %269 = vset.pattern.permute.xlu0 1
  %270 = vperm.xlu0 %269, %v32
  %v271 = vpop.permute.xlu0 %270
  %273 = vset.pattern.permute.xlu0 1
  %274 = vperm.xlu0 %273, %v33
  %v275 = vpop.permute.xlu0 %274
  %277 = vset.pattern.permute.xlu0 1
  %278 = vperm.xlu0 %277, %v34
  %v279 = vpop.permute.xlu0 %278
  %281 = vset.pattern.permute.xlu0 1
  %282 = vperm.xlu0 %281, %v35
  %v283 = vpop.permute.xlu0 %282
  %285 = vset.pattern.permute.xlu0 1
  %286 = vperm.xlu0 %285, %v36
  %v287 = vpop.permute.xlu0 %286
  %289 = vset.pattern.permute.xlu0 1
  %290 = vperm.xlu0 %289, %v37
  %v291 = vpop.permute.xlu0 %290
  %293 = vset.pattern.permute.xlu0 1
  %294 = vperm.xlu0 %293, %v38
  %v295 = vpop.permute.xlu0 %294
  %297 = vset.pattern.permute.xlu0 1
  %298 = vperm.xlu0 %297, %v39
  %v299 = vpop.permute.xlu0 %298
  %301 = vset.pattern.permute.xlu0 1
  %302 = vperm.xlu0 %301, %v40
  %v303 = vpop.permute.xlu0 %302
  %305 = vset.pattern.permute.xlu0 1
  %306 = vperm.xlu0 %305, %v41
  %v307 = vpop.permute.xlu0 %306
  %309 = vset.pattern.permute.xlu0 1
  %310 = vperm.xlu0 %309, %v42
  %v311 = vpop.permute.xlu0 %310
  %313 = vset.pattern.permute.xlu0 1
  %314 = vperm.xlu0 %313, %v43
  %v315 = vpop.permute.xlu0 %314
  %317 = vset.pattern.permute.xlu0 1
  %318 = vperm.xlu0 %317, %v44
  %v319 = vpop.permute.xlu0 %318
  %321 = vset.pattern.permute.xlu0 1
  %322 = vperm.xlu0 %321, %v45
  %v323 = vpop.permute.xlu0 %322
  %325 = vset.pattern.permute.xlu0 1
  %326 = vperm.xlu0 %325, %v46
  %v327 = vpop.permute.xlu0 %326
  %329 = vset.pattern.permute.xlu0 1
  %330 = vperm.xlu0 %329, %v47
  %v331 = vpop.permute.xlu0 %330
  %333 = vset.pattern.permute.xlu0 1
  %334 = vperm.xlu0 %333, %v48
  %v335 = vpop.permute.xlu0 %334
  %337 = vset.pattern.permute.xlu0 1
  %338 = vperm.xlu0 %337, %v49
  %v339 = vpop.permute.xlu0 %338
  %341 = vset.pattern.permute.xlu0 1
  %342 = vperm.xlu0 %341, %v50
  %v343 = vpop.permute.xlu0 %342
  %345 = vset.pattern.permute.xlu0 1
  %346 = vperm.xlu0 %345, %v51
  %v347 = vpop.permute.xlu0 %346
  %349 = vset.pattern.permute.xlu0 1
  %350 = vperm.xlu0 %349, %v52
  %v351 = vpop.permute.xlu0 %350
  %353 = vset.pattern.permute.xlu0 1
  %354 = vperm.xlu0 %353, %v53
  %v355 = vpop.permute.xlu0 %354
  %357 = vset.pattern.permute.xlu0 1
  %358 = vperm.xlu0 %357, %v54
  %v359 = vpop.permute.xlu0 %358
  %361 = vset.pattern.permute.xlu0 1
  %362 = vperm.xlu0 %361, %v55
  %v363 = vpop.permute.xlu0 %362
  %365 = vset.pattern.permute.xlu0 1
  %366 = vperm.xlu0 %365, %v56
  %v367 = vpop.permute.xlu0 %366
  %369 = vset.pattern.permute.xlu0 1
  %370 = vperm.xlu0 %369, %v57
  %v371 = vpop.permute.xlu0 %370
  %373 = vset.pattern.permute.xlu0 1
  %374 = vperm.xlu0 %373, %v58
  %v375 = vpop.permute.xlu0 %374
  %377 = vset.pattern.permute.xlu0 1
  %378 = vperm.xlu0 %377, %v59
  %v379 = vpop.permute.xlu0 %378
  %381 = vset.pattern.permute.xlu0 1
  %382 = vperm.xlu0 %381, %v60
  %v383 = vpop.permute.xlu0 %382
  %v385 = vlaneseq
  %v386 = vshrl.u32 %v385, 7
  %v387 = vsub.s32 1, %v386
  %v388 = vrot.slane %v28, %v387
  %v389 = vmul.f32 %v259, %v388
  %v390 = vmul.f32 %v263, %v388
  %v391 = vmul.f32 %v267, %v388
  %v392 = vmul.f32 %v271, %v388
  %v393 = vmul.f32 %v275, %v388
  %v394 = vmul.f32 %v279, %v388
  %v395 = vmul.f32 %v283, %v388
  %v396 = vmul.f32 %v287, %v388
  %v397 = vmul.f32 %v291, %v388
  %v398 = vmul.f32 %v295, %v388
  %v399 = vmul.f32 %v299, %v388
  %v400 = vmul.f32 %v303, %v388
  %v401 = vmul.f32 %v307, %v388
  %v402 = vmul.f32 %v311, %v388
  %v403 = vmul.f32 %v315, %v388
  %v404 = vmul.f32 %v319, %v388
  %v405 = vmul.f32 %v323, %v388
  %v406 = vmul.f32 %v327, %v388
  %v407 = vmul.f32 %v331, %v388
  %v408 = vmul.f32 %v335, %v388
  %v409 = vmul.f32 %v339, %v388
  %v410 = vmul.f32 %v343, %v388
  %v411 = vmul.f32 %v347, %v388
  %v412 = vmul.f32 %v351, %v388
  %v413 = vmul.f32 %v355, %v388
  %v414 = vmul.f32 %v359, %v388
  %v415 = vmul.f32 %v363, %v388
  %v416 = vmul.f32 %v367, %v388
  %v417 = vmul.f32 %v371, %v388
  %v418 = vmul.f32 %v375, %v388
  %v419 = vmul.f32 %v379, %v388
  %v420 = vmul.f32 %v383, %v388
  %v421 = vadd.f32 %v225, %v389
  %v422 = vadd.f32 %v226, %v390
  %v423 = vadd.f32 %v227, %v391
  %v424 = vadd.f32 %v228, %v392
  %v425 = vadd.f32 %v229, %v393
  %v426 = vadd.f32 %v230, %v394
  %v427 = vadd.f32 %v231, %v395
  %v428 = vadd.f32 %v232, %v396
  %v429 = vadd.f32 %v233, %v397
  %v430 = vadd.f32 %v234, %v398
  %v431 = vadd.f32 %v235, %v399
  %v432 = vadd.f32 %v236, %v400
  %v433 = vadd.f32 %v237, %v401
  %v434 = vadd.f32 %v238, %v402
  %v435 = vadd.f32 %v239, %v403
  %v436 = vadd.f32 %v240, %v404
  %v437 = vadd.f32 %v241, %v405
  %v438 = vadd.f32 %v242, %v406
  %v439 = vadd.f32 %v243, %v407
  %v440 = vadd.f32 %v244, %v408
  %v441 = vadd.f32 %v245, %v409
  %v442 = vadd.f32 %v246, %v410
  %v443 = vadd.f32 %v247, %v411
  %v444 = vadd.f32 %v248, %v412
  %v445 = vadd.f32 %v249, %v413
  %v446 = vadd.f32 %v250, %v414
  %v447 = vadd.f32 %v251, %v415
  %v448 = vadd.f32 %v252, %v416
  %v449 = vadd.f32 %v253, %v417
  %v450 = vadd.f32 %v254, %v418
  %v451 = vadd.f32 %v255, %v419
  %v452 = vadd.f32 %v256, %v420
  %v453 = vld [vmem:[%s2] sm:$0xff]
  %v454 = vld [vmem:[%s2 + $0x8] sm:$0xff]
  %v455 = vld [vmem:[%s2 + $0x10] sm:$0xff]
  %v456 = vld [vmem:[%s2 + $0x18] sm:$0xff]
  %v457 = vld [vmem:[%s2 + $0x20] sm:$0xff]
  %v458 = vld [vmem:[%s2 + $0x28] sm:$0xff]
  %v459 = vld [vmem:[%s2 + $0x30] sm:$0xff]
  %v460 = vld [vmem:[%s2 + $0x38] sm:$0xff]
  %v461 = vld [vmem:[%s2 + $0x40] sm:$0xff]
  %v462 = vld [vmem:[%s2 + $0x48] sm:$0xff]
  %v463 = vld [vmem:[%s2 + $0x50] sm:$0xff]
  %v464 = vld [vmem:[%s2 + $0x58] sm:$0xff]
  %v465 = vld [vmem:[%s2 + $0x60] sm:$0xff]
  %v466 = vld [vmem:[%s2 + $0x68] sm:$0xff]
  %v467 = vld [vmem:[%s2 + $0x70] sm:$0xff]
  %v468 = vld [vmem:[%s2 + $0x78] sm:$0xff]
  %v469 = vld [vmem:[%s2 + $0x80] sm:$0xff]
  %v470 = vld [vmem:[%s2 + $0x88] sm:$0xff]
  %v471 = vld [vmem:[%s2 + $0x90] sm:$0xff]
  %v472 = vld [vmem:[%s2 + $0x98] sm:$0xff]
  %v473 = vld [vmem:[%s2 + $0xa0] sm:$0xff]
  %v474 = vld [vmem:[%s2 + $0xa8] sm:$0xff]
  %v475 = vld [vmem:[%s2 + $0xb0] sm:$0xff]
  %v476 = vld [vmem:[%s2 + $0xb8] sm:$0xff]
  %v477 = vld [vmem:[%s2 + $0xc0] sm:$0xff]
  %v478 = vld [vmem:[%s2 + $0xc8] sm:$0xff]
  %v479 = vld [vmem:[%s2 + $0xd0] sm:$0xff]
  %v480 = vld [vmem:[%s2 + $0xd8] sm:$0xff]
  %v481 = vld [vmem:[%s2 + $0xe0] sm:$0xff]
  %v482 = vld [vmem:[%s2 + $0xe8] sm:$0xff]
  %v483 = vld [vmem:[%s2 + $0xf0] sm:$0xff]
  %v484 = vld [vmem:[%s2 + $0xf8] sm:$0xff]
  %486 = vset.pattern.permute.xlu0 0
  %487 = vperm.xlu0 %486, %v453
  %v488 = vpop.permute.xlu0 %487
  %491 = vset.pattern.permute.xlu0 0
  %492 = vperm.xlu0 %491, %v454
  %v493 = vpop.permute.xlu0 %492
  %496 = vset.pattern.permute.xlu0 0
  %497 = vperm.xlu0 %496, %v455
  %v498 = vpop.permute.xlu0 %497
  %501 = vset.pattern.permute.xlu0 0
  %502 = vperm.xlu0 %501, %v456
  %v503 = vpop.permute.xlu0 %502
  %506 = vset.pattern.permute.xlu0 0
  %507 = vperm.xlu0 %506, %v457
  %v508 = vpop.permute.xlu0 %507
  %511 = vset.pattern.permute.xlu0 0
  %512 = vperm.xlu0 %511, %v458
  %v513 = vpop.permute.xlu0 %512
  %516 = vset.pattern.permute.xlu0 0
  %517 = vperm.xlu0 %516, %v459
  %v518 = vpop.permute.xlu0 %517
  %521 = vset.pattern.permute.xlu0 0
  %522 = vperm.xlu0 %521, %v460
  %v523 = vpop.permute.xlu0 %522
  %526 = vset.pattern.permute.xlu0 0
  %527 = vperm.xlu0 %526, %v461
  %v528 = vpop.permute.xlu0 %527
  %531 = vset.pattern.permute.xlu0 0
  %532 = vperm.xlu0 %531, %v462
  %v533 = vpop.permute.xlu0 %532
  %536 = vset.pattern.permute.xlu0 0
  %537 = vperm.xlu0 %536, %v463
  %v538 = vpop.permute.xlu0 %537
  %541 = vset.pattern.permute.xlu0 0
  %542 = vperm.xlu0 %541, %v464
  %v543 = vpop.permute.xlu0 %542
  %546 = vset.pattern.permute.xlu0 0
  %547 = vperm.xlu0 %546, %v465
  %v548 = vpop.permute.xlu0 %547
  %551 = vset.pattern.permute.xlu0 0
  %552 = vperm.xlu0 %551, %v466
  %v553 = vpop.permute.xlu0 %552
  %556 = vset.pattern.permute.xlu0 0
  %557 = vperm.xlu0 %556, %v467
  %v558 = vpop.permute.xlu0 %557
  %561 = vset.pattern.permute.xlu0 0
  %562 = vperm.xlu0 %561, %v468
  %v563 = vpop.permute.xlu0 %562
  %566 = vset.pattern.permute.xlu0 0
  %567 = vperm.xlu0 %566, %v469
  %v568 = vpop.permute.xlu0 %567
  %571 = vset.pattern.permute.xlu0 0
  %572 = vperm.xlu0 %571, %v470
  %v573 = vpop.permute.xlu0 %572
  %576 = vset.pattern.permute.xlu0 0
  %577 = vperm.xlu0 %576, %v471
  %v578 = vpop.permute.xlu0 %577
  %581 = vset.pattern.permute.xlu0 0
  %582 = vperm.xlu0 %581, %v472
  %v583 = vpop.permute.xlu0 %582
  %586 = vset.pattern.permute.xlu0 0
  %587 = vperm.xlu0 %586, %v473
  %v588 = vpop.permute.xlu0 %587
  %591 = vset.pattern.permute.xlu0 0
  %592 = vperm.xlu0 %591, %v474
  %v593 = vpop.permute.xlu0 %592
  %596 = vset.pattern.permute.xlu0 0
  %597 = vperm.xlu0 %596, %v475
  %v598 = vpop.permute.xlu0 %597
  %601 = vset.pattern.permute.xlu0 0
  %602 = vperm.xlu0 %601, %v476
  %v603 = vpop.permute.xlu0 %602
  %606 = vset.pattern.permute.xlu0 0
  %607 = vperm.xlu0 %606, %v477
  %v608 = vpop.permute.xlu0 %607
  %611 = vset.pattern.permute.xlu0 0
  %612 = vperm.xlu0 %611, %v478
  %v613 = vpop.permute.xlu0 %612
  %616 = vset.pattern.permute.xlu0 0
  %617 = vperm.xlu0 %616, %v479
  %v618 = vpop.permute.xlu0 %617
  %621 = vset.pattern.permute.xlu0 0
  %622 = vperm.xlu0 %621, %v480
  %v623 = vpop.permute.xlu0 %622
  %626 = vset.pattern.permute.xlu0 0
  %627 = vperm.xlu0 %626, %v481
  %v628 = vpop.permute.xlu0 %627
  %631 = vset.pattern.permute.xlu0 0
  %632 = vperm.xlu0 %631, %v482
  %v633 = vpop.permute.xlu0 %632
  %636 = vset.pattern.permute.xlu0 0
  %637 = vperm.xlu0 %636, %v483
  %v638 = vpop.permute.xlu0 %637
  %641 = vset.pattern.permute.xlu0 0
  %642 = vperm.xlu0 %641, %v484
  %v643 = vpop.permute.xlu0 %642
  %v645 = vadd.f32 %v421, %v488
  %v646 = vadd.f32 %v422, %v493
  %v647 = vadd.f32 %v423, %v498
  %v648 = vadd.f32 %v424, %v503
  %v649 = vadd.f32 %v425, %v508
  %v650 = vadd.f32 %v426, %v513
  %v651 = vadd.f32 %v427, %v518
  %v652 = vadd.f32 %v428, %v523
  %v653 = vadd.f32 %v429, %v528
  %v654 = vadd.f32 %v430, %v533
  %v655 = vadd.f32 %v431, %v538
  %v656 = vadd.f32 %v432, %v543
  %v657 = vadd.f32 %v433, %v548
  %v658 = vadd.f32 %v434, %v553
  %v659 = vadd.f32 %v435, %v558
  %v660 = vadd.f32 %v436, %v563
  %v661 = vadd.f32 %v437, %v568
  %v662 = vadd.f32 %v438, %v573
  %v663 = vadd.f32 %v439, %v578
  %v664 = vadd.f32 %v440, %v583
  %v665 = vadd.f32 %v441, %v588
  %v666 = vadd.f32 %v442, %v593
  %v667 = vadd.f32 %v443, %v598
  %v668 = vadd.f32 %v444, %v603
  %v669 = vadd.f32 %v445, %v608
  %v670 = vadd.f32 %v446, %v613
  %v671 = vadd.f32 %v447, %v618
  %v672 = vadd.f32 %v448, %v623
  %v673 = vadd.f32 %v449, %v628
  %v674 = vadd.f32 %v450, %v633
  %v675 = vadd.f32 %v451, %v638
  %v676 = vadd.f32 %v452, %v643
  %v677 = vmax.f32 %v645, 0.0
  %v678 = vmax.f32 %v646, 0.0
  %v679 = vmax.f32 %v647, 0.0
  %v680 = vmax.f32 %v648, 0.0
  %v681 = vmax.f32 %v649, 0.0
  %v682 = vmax.f32 %v650, 0.0
  %v683 = vmax.f32 %v651, 0.0
  %v684 = vmax.f32 %v652, 0.0
  %v685 = vmax.f32 %v653, 0.0
  %v686 = vmax.f32 %v654, 0.0
  %v687 = vmax.f32 %v655, 0.0
  %v688 = vmax.f32 %v656, 0.0
  %v689 = vmax.f32 %v657, 0.0
  %v690 = vmax.f32 %v658, 0.0
  %v691 = vmax.f32 %v659, 0.0
  %v692 = vmax.f32 %v660, 0.0
  %v693 = vmax.f32 %v661, 0.0
  %v694 = vmax.f32 %v662, 0.0
  %v695 = vmax.f32 %v663, 0.0
  %v696 = vmax.f32 %v664, 0.0
  %v697 = vmax.f32 %v665, 0.0
  %v698 = vmax.f32 %v666, 0.0
  %v699 = vmax.f32 %v667, 0.0
  %v700 = vmax.f32 %v668, 0.0
  %v701 = vmax.f32 %v669, 0.0
  %v702 = vmax.f32 %v670, 0.0
  %v703 = vmax.f32 %v671, 0.0
  %v704 = vmax.f32 %v672, 0.0
  %v705 = vmax.f32 %v673, 0.0
  %v706 = vmax.f32 %v674, 0.0
  %v707 = vmax.f32 %v675, 0.0
  %v708 = vmax.f32 %v676, 0.0
  %v709 = vld [vmem:[%s3] sm:$0xff]
  %v710 = vld [vmem:[%s3 + $0x8] sm:$0xff]
  %v711 = vld [vmem:[%s3 + $0x10] sm:$0xff]
  %v712 = vld [vmem:[%s3 + $0x18] sm:$0xff]
  %v713 = vld [vmem:[%s3 + $0x20] sm:$0xff]
  %v714 = vld [vmem:[%s3 + $0x28] sm:$0xff]
  %v715 = vld [vmem:[%s3 + $0x30] sm:$0xff]
  %v716 = vld [vmem:[%s3 + $0x38] sm:$0xff]
  %v717 = vpack.c.bf16 %v678, %v677
  %v718 = vpack.c.bf16 %v680, %v679
  %v719 = vpack.c.bf16 %v682, %v681
  %v720 = vpack.c.bf16 %v684, %v683
  %v721 = vpack.c.bf16 %v686, %v685
  %v722 = vpack.c.bf16 %v688, %v687
  %v723 = vpack.c.bf16 %v690, %v689
  %v724 = vpack.c.bf16 %v692, %v691
  %v725 = vpack.c.bf16 %v694, %v693
  %v726 = vpack.c.bf16 %v696, %v695
  %v727 = vpack.c.bf16 %v698, %v697
  %v728 = vpack.c.bf16 %v700, %v699
  %v729 = vpack.c.bf16 %v702, %v701
  %v730 = vpack.c.bf16 %v704, %v703
  %v731 = vpack.c.bf16 %v706, %v705
  %v732 = vpack.c.bf16 %v708, %v707
  %v733 = vld [vmem:[%s4] sm:$0xff]
  %v734 = vld [vmem:[%s4 + $0x8] sm:$0xff]
  %v735 = vld [vmem:[%s4 + $0x10] sm:$0xff]
  %v736 = vld [vmem:[%s4 + $0x18] sm:$0xff]
  %v737 = vld [vmem:[%s4 + $0x20] sm:$0xff]
  %v738 = vld [vmem:[%s4 + $0x28] sm:$0xff]
  %v739 = vld [vmem:[%s4 + $0x30] sm:$0xff]
  %v740 = vld [vmem:[%s4 + $0x38] sm:$0xff]
  %742 = vset.pattern.permute.xlu0 0
  %743 = vperm.xlu0 %742, %v733
  %v744 = vpop.permute.xlu0 %743
  %747 = vset.pattern.permute.xlu0 0
  %748 = vperm.xlu0 %747, %v734
  %v749 = vpop.permute.xlu0 %748
  %752 = vset.pattern.permute.xlu0 0
  %753 = vperm.xlu0 %752, %v735
  %v754 = vpop.permute.xlu0 %753
  %757 = vset.pattern.permute.xlu0 0
  %758 = vperm.xlu0 %757, %v736
  %v759 = vpop.permute.xlu0 %758
  %762 = vset.pattern.permute.xlu0 0
  %763 = vperm.xlu0 %762, %v737
  %v764 = vpop.permute.xlu0 %763
  %767 = vset.pattern.permute.xlu0 0
  %768 = vperm.xlu0 %767, %v738
  %v769 = vpop.permute.xlu0 %768
  %772 = vset.pattern.permute.xlu0 0
  %773 = vperm.xlu0 %772, %v739
  %v774 = vpop.permute.xlu0 %773
  %777 = vset.pattern.permute.xlu0 0
  %778 = vperm.xlu0 %777, %v740
  %v779 = vpop.permute.xlu0 %778
  %v789 = vunpack.c.l.b16 %v709
  %v790 = vunpack.c.h.b16 %v709
  %v791 = vunpack.c.l.b16 %v710
  %v792 = vunpack.c.h.b16 %v710
  %v793 = vunpack.c.l.b16 %v711
  %v794 = vunpack.c.h.b16 %v711
  %v795 = vunpack.c.l.b16 %v712
  %v796 = vunpack.c.h.b16 %v712
  %v797 = vunpack.c.l.b16 %v713
  %v798 = vunpack.c.h.b16 %v713
  %v799 = vunpack.c.l.b16 %v714
  %v800 = vunpack.c.h.b16 %v714
  %v801 = vunpack.c.l.b16 %v715
  %v802 = vunpack.c.h.b16 %v715
  %v803 = vunpack.c.l.b16 %v716
  %v804 = vunpack.c.h.b16 %v716
  %v805 = vpack.c.b16 %v791, %v789
  %v806 = vpack.c.b16 %v792, %v790
  %v807 = vpack.c.b16 %v795, %v793
  %v808 = vpack.c.b16 %v796, %v794
  %v809 = vpack.c.b16 %v799, %v797
  %v810 = vpack.c.b16 %v800, %v798
  %v811 = vpack.c.b16 %v803, %v801
  %v812 = vpack.c.b16 %v804, %v802
  %821 = vmatprep.subr.bf16.mxu0 0
  %822 = vmatpush1.bf16.msra.mxu0 %v724
  %823 = vmatprep.subr.bf16.mxu0 0
  %824 = vmatpush1.bf16.msra.mxu0 %v723
  %825 = vmatprep.subr.bf16.mxu0 0
  %826 = vmatpush1.bf16.msra.mxu0 %v722
  %827 = vmatprep.subr.bf16.mxu0 0
  %828 = vmatpush1.bf16.msra.mxu0 %v721
  %829 = vmatprep.subr.bf16.mxu0 0
  %830 = vmatpush1.bf16.msra.mxu0 %v720
  %831 = vmatprep.subr.bf16.mxu0 0
  %832 = vmatpush1.bf16.msra.mxu0 %v719
  %833 = vmatprep.subr.bf16.mxu0 0
  %834 = vmatpush1.bf16.msra.mxu0 %v718
  %835 = vmatprep.subr.bf16.mxu0 0
  %836 = vmatpush1.bf16.msra.mxu0 %v717
  %837 = vmatprep.subr.bf16.mxu0 0
  %838 = vmatpush2.bf16.msra.mxu0 %v732
  %839 = vmatprep.subr.bf16.mxu0 0
  %840 = vmatpush2.bf16.msra.mxu0 %v731
  %841 = vmatprep.subr.bf16.mxu0 0
  %842 = vmatpush2.bf16.msra.mxu0 %v730
  %843 = vmatprep.subr.bf16.mxu0 0
  %844 = vmatpush2.bf16.msra.mxu0 %v729
  %845 = vmatprep.subr.bf16.mxu0 0
  %846 = vmatpush2.bf16.msra.mxu0 %v728
  %847 = vmatprep.subr.bf16.mxu0 0
  %848 = vmatpush2.bf16.msra.mxu0 %v727
  %849 = vmatprep.subr.bf16.mxu0 0
  %850 = vmatpush2.bf16.msra.mxu0 %v726
  %851 = vmatprep.subr.bf16.mxu0 0
  %852 = vmatpush2.bf16.msra.mxu0 %v725
  %853 = vmatprep.mubr.bf16.mxu0 %v806
  %854 = vmatmul.mubr.bf16.gmra.mxu0 %v805
  %v855 = vpop.f32.mrf.mxu0
  %v856 = vadd.f32 %v744, %v855
  %v857 = vpop.f32.mrf.mxu0
  %v858 = vpop.f32.mrf.mxu0
  %v859 = vadd.f32 %v749, %v858
  %v860 = vpop.f32.mrf.mxu0
  %861 = vmatprep.mubr.bf16.mxu0 %v808
  %862 = vmatmul.mubr.bf16.gmra.mxu0 %v807
  %v863 = vpop.f32.mrf.mxu0
  %v864 = vadd.f32 %v754, %v863
  %v865 = vpop.f32.mrf.mxu0
  %v866 = vpop.f32.mrf.mxu0
  %v867 = vadd.f32 %v759, %v866
  %v868 = vpop.f32.mrf.mxu0
  %869 = vmatprep.mubr.bf16.mxu0 %v810
  %870 = vmatmul.mubr.bf16.gmra.mxu0 %v809
  %v871 = vpop.f32.mrf.mxu0
  %v872 = vadd.f32 %v764, %v871
  %v873 = vpop.f32.mrf.mxu0
  %v874 = vpop.f32.mrf.mxu0
  %v875 = vadd.f32 %v769, %v874
  %v876 = vpop.f32.mrf.mxu0
  %877 = vmatprep.mubr.bf16.mxu0 %v812
  %878 = vmatmul.mubr.bf16.gmra.mxu0 %v811
  %v879 = vpop.f32.mrf.mxu0
  %v880 = vadd.f32 %v774, %v879
  %v881 = vpop.f32.mrf.mxu0
  %v882 = vpop.f32.mrf.mxu0
  %v883 = vadd.f32 %v779, %v882
  %v884 = vpop.f32.mrf.mxu0
  %885 = vdwg.mxu0
  %v886 = vmax.f32 %v856, 0.0
  %v887 = vmax.f32 %v859, 0.0
  %v888 = vmax.f32 %v864, 0.0
  %v889 = vmax.f32 %v867, 0.0
  %v890 = vmax.f32 %v872, 0.0
  %v891 = vmax.f32 %v875, 0.0
  %v892 = vmax.f32 %v880, 0.0
  %v893 = vmax.f32 %v883, 0.0
  %v894 = vld [vmem:[%s5] sm:$0xff]
  %v895 = vld [vmem:[%s5 + $0x8] sm:$0xff]
  %v896 = vld [vmem:[%s5 + $0x10] sm:$0xff]
  %v897 = vld [vmem:[%s5 + $0x18] sm:$0xff]
  %v898 = vld [vmem:[%s5 + $0x20] sm:$0xff]
  %v899 = vld [vmem:[%s5 + $0x28] sm:$0xff]
  %v900 = vld [vmem:[%s5 + $0x30] sm:$0xff]
  %v901 = vld [vmem:[%s5 + $0x38] sm:$0xff]
  %903 = vset.pattern.permute.xlu0 0
  %904 = vperm.xlu0 %903, %v894
  %v905 = vpop.permute.xlu0 %904
  %908 = vset.pattern.permute.xlu0 0
  %909 = vperm.xlu0 %908, %v895
  %v910 = vpop.permute.xlu0 %909
  %913 = vset.pattern.permute.xlu0 0
  %914 = vperm.xlu0 %913, %v896
  %v915 = vpop.permute.xlu0 %914
  %918 = vset.pattern.permute.xlu0 0
  %919 = vperm.xlu0 %918, %v897
  %v920 = vpop.permute.xlu0 %919
  %923 = vset.pattern.permute.xlu0 0
  %924 = vperm.xlu0 %923, %v898
  %v925 = vpop.permute.xlu0 %924
  %928 = vset.pattern.permute.xlu0 0
  %929 = vperm.xlu0 %928, %v899
  %v930 = vpop.permute.xlu0 %929
  %933 = vset.pattern.permute.xlu0 0
  %934 = vperm.xlu0 %933, %v900
  %v935 = vpop.permute.xlu0 %934
  %938 = vset.pattern.permute.xlu0 0
  %939 = vperm.xlu0 %938, %v901
  %v940 = vpop.permute.xlu0 %939
  %v942 = vmul.f32 %v905, %v886
  %v943 = vmul.f32 %v910, %v887
  %v944 = vmul.f32 %v915, %v888
  %v945 = vmul.f32 %v920, %v889
  %v946 = vmul.f32 %v925, %v890
  %v947 = vmul.f32 %v930, %v891
  %v948 = vmul.f32 %v935, %v892
  %v949 = vmul.f32 %v940, %v893
  %v950 = vadd.f32 %v942, %v943
  %v951 = vadd.f32 %v950, %v944
  %v952 = vadd.f32 %v951, %v945
  %v953 = vadd.f32 %v952, %v946
  %v954 = vadd.f32 %v953, %v947
  %v955 = vadd.f32 %v954, %v948
  %v956 = vadd.f32 %v955, %v949
  %v957 = vrot.slane %v956, 4
  %v958 = vadd.f32 %v956, %v957
  %v959 = vrot.slane %v958, 2
  %v960 = vadd.f32 %v958, %v959
  %v961 = vrot.slane %v960, 1
  %v962 = vadd.f32 %v960, %v961
  %s963 = sld [smem:[#allocation2]]
  %v964 = vstv %s963
  %v965 = vadd.f32 %v962, %v964
  %v966 = vsub.f32 0.0, %v965
  %v967 = vmul.f32 %v966, 1.442695
  %v968 = vpow.pop %v967
  %v969 = vadd.f32 %v968, 1.0
  %v970 = vrcp.pop %v969
  %v971 = vmul.f32 1.0, %v970
  %972 = vst [vmem:[%s7] sm:$0x1] %v971
  // Predicated region
  $region30: #{discriminator_forward.1} parent=0 // pred_check
    _
  $region31: #{discriminator_forward.1} parent=0 // pred_check_branch
    %974 = sbr.rel (0) target = $region33
  $region32: #{discriminator_forward.1} parent=0 // pred_region
    _
  $region33: #{discriminator_forward.1} parent=0 // pred_fallthru
    _
  // Predicated region
  $region34: #{discriminator_forward.1} parent=0 // pred_check
    _
  $region35: #{discriminator_forward.1} parent=0 // pred_check_branch
    %976 = sbr.rel (0) target = $region37
  $region36: #{discriminator_forward.1} parent=0 // pred_region
    _
  $region37: #{discriminator_forward.1} parent=0 // pred_fallthru
    _

</llo_original>
